<compile_context>
chip_gen: v6e
topology: v6e:2x2x1
jax: 0.10.0
libtpu: 0.0.40
codegen_flags: <defaults>
</compile_context>

<pallas_src>
import functools
import math

import jax
import jax.numpy as jnp
import numpy as np
from jax.experimental import pallas as pl
from jax.experimental.pallas import tpu as pltpu


_MXU_DIM = 256  # native MXU M/K on v6e/v7x; a 256 block splits into two full 128 passes on v5e


# ---------------------------------------------------------------------------
# Pallas kernel: full non_bottleneck_1d forward on one (rows, H*W) block
# ---------------------------------------------------------------------------
def _nb1d_kernel(x_ref, wm_ref, pv_ref, out_ref, *, W, dilated):
    """x_ref  : (R, S) f32, R = images_per_block*C rows, S = H*W lanes.
       wm_ref : (4, R, 3R) bf16 tap-stacked block-diag channel-mix matrices.
       pv_ref : (R, 8) f32 per-row params:
                col0 = b1, col1 = b3, col2/3 = bn1 scale/shift (b2 folded),
                col4/5 = bn2 scale/shift (b4 folded), col6/7 unused.
    """
    x = x_ref[...]                                   # (R, S) f32, lane-dense tile
    R, S = x.shape

    # Lane-only index vectors, shape (1, S); broadcast over sublanes inside the
    # masks (keeps no (R, S) int32 state live across the four convs).
    lane = jax.lax.broadcasted_iota(jnp.int32, (1, S), 1)       # flat spatial idx
    if (W & (W - 1)) == 0:                                      # w = s % W
        w_idx = jnp.bitwise_and(lane, W - 1)
    else:
        w_idx = jax.lax.rem(lane, jnp.int32(W))

    def taps(t, d, over_h):
        # [t shifted -d ; t ; t shifted +d] along H or W with zero "same" padding,
        # stacked so the channel mix over all three taps is one MXU contraction.
        k = d * W if over_h else d
        fwd = pltpu.roll(t, (S - k) % S, 1)          # fwd[s] = t[s + k] (pre-mask)
        bwd = pltpu.roll(t, k % S, 1)                # bwd[s] = t[s - k] (pre-mask)
        if over_h:
            m_fwd, m_bwd = lane < (S - k), lane >= k
        else:
            m_fwd, m_bwd = w_idx < (W - d), w_idx >= d
        t_m = jnp.where(m_bwd, bwd, 0.0)             # (1, S) mask broadcasts over rows
        t_p = jnp.where(m_fwd, fwd, 0.0)
        return jnp.concatenate([t_m, t, t_p], axis=0).astype(jnp.bfloat16)

    def conv3(t, ci, d, over_h):
        # 3-tap cross-correlation (PyTorch Conv2d) + channel mixing:
        # one (R x 3R) @ (3R x S) bf16 matmul, f32 accumulation on the MXU.
        return jnp.dot(wm_ref[ci], taps(t, d, over_h),
                       preferred_element_type=jnp.float32)

    o = jnp.maximum(conv3(x, 0, 1, True) + pv_ref[:, 0:1], 0.0)         # conv3x1_1 + b1, relu
    o = conv3(o, 1, 1, False)                                           # conv1x3_1 (b2 in bn1)
    o = jnp.maximum(o * pv_ref[:, 2:3] + pv_ref[:, 3:4], 0.0)           # bn1, relu
    o = jnp.maximum(conv3(o, 2, dilated, True) + pv_ref[:, 1:2], 0.0)   # conv3x1_2 + b3, relu
    o = conv3(o, 3, dilated, False)                                     # conv1x3_2 (b4 in bn2)
    o = o * pv_ref[:, 4:5] + pv_ref[:, 5:6]                             # bn2
    # TODO(synk): Dropout2d with p>0 / training-mode BN not implemented (p==0 path).
    out_ref[...] = jnp.maximum(o + x, 0.0).astype(out_ref.dtype)


# ---------------------------------------------------------------------------
# Wrapper: layout, block sizing, parameter packing, grid + BlockSpecs
# ---------------------------------------------------------------------------
def _choose_row_block(rows, C, target=_MXU_DIM):
    """Rows per grid block: whole images (multiple of C), sublane aligned
    (multiple of 8), sized to fill the MXU M/K dims but never past them —
    extra rows go to the grid, not into a bigger block-diagonal."""
    base = C * 8 // math.gcd(C, 8)                  # lcm(C, 8)
    if base >= target:
        blk = base                                  # ipb = minimum alignment allows
    else:
        blk = base * (target // base)               # largest aligned block <= MXU dim
    rows_aligned = base * pl.cdiv(rows, base)
    return min(blk, rows_aligned)


def _pack_params(params, C, images_per_block, eps):
    eye = jnp.eye(images_per_block, dtype=jnp.float32)

    def conv_mix(w):
        # (C, C, 3, 1) or (C, C, 1, 3) -> (blk, 3*blk):
        # the three taps' block-diagonal channel-mix matrices kron(I_ipb, W_tap),
        # packed side by side so all taps contract in a single MXU matmul.
        w = jnp.asarray(w, jnp.float32).reshape(C, C, 3)        # (Cout, Cin, tap)
        return jnp.concatenate([jnp.kron(eye, w[:, :, t]) for t in range(3)], axis=1)

    wm = jnp.stack([conv_mix(params[k]) for k in ("w1", "w2", "w3", "w4")], axis=0)
    wm = wm.astype(jnp.bfloat16)                    # MXU-native operand dtype

    def fold_bn(p, conv_bias):
        # Eval-mode BN -> per-channel affine, with the preceding conv's bias folded
        # into the shift (exact: no nonlinearity between that conv and its BN).
        scale = p["gamma"] / jnp.sqrt(p["var"] + eps)
        shift = p["beta"] - p["mean"] * scale + scale * conv_bias
        return scale, shift

    s1, t1 = fold_bn(params["bn1"], params["b2"])
    s2, t2 = fold_bn(params["bn2"], params["b4"])
    zero = jnp.zeros_like(s1)
    cols = jnp.stack([params["b1"], params["b3"], s1, t1, s2, t2, zero, zero],
                     axis=1).astype(jnp.float32)                 # (C, 8)
    pv = jnp.tile(cols, (images_per_block, 1))                   # (blk, 8)
    return wm, pv


def non_bottleneck_1d_forward(x_nchw, params, dilated, eps=1e-3):
    N, C, H, W = x_nchw.shape
    S = H * W
    rows = N * C
    x2d = jnp.asarray(x_nchw, jnp.float32).reshape(rows, S)   # free reshape, no transpose

    blk = _choose_row_block(rows, C)
    rows_pad = blk * pl.cdiv(rows, blk)
    if rows_pad != rows:
        # Zero rows form whole fake images; the block-diagonal channel mix never
        # couples them to real rows, and they are sliced off below.
        x2d = jnp.pad(x2d, ((0, rows_pad - rows), (0, 0)))

    wm, pv = _pack_params(params, C, blk // C, eps)

    # Explicit VMEM budget (sized so it stays within v7x's 64 MiB physical VMEM):
    act = blk * S * 4
    vmem_need = (4 * act                               # double-buffered in + out tiles
                 + 2 * (wm.size * 2 + pv.size * 4)     # grid-invariant weights/params (2 bufs)
                 + 12 * act)                           # live f32 intermediates in the body
    vmem_limit = int(min(max(2 * vmem_need, 8 << 20), 64 << 20))

    out2d = pl.pallas_call(
        functools.partial(_nb1d_kernel, W=W, dilated=dilated),
        out_shape=jax.ShapeDtypeStruct((rows_pad, S), jnp.float32),
        grid_spec=pltpu.PrefetchScalarGridSpec(
            num_scalar_prefetch=0,
            grid=(rows_pad // blk,),       # >=2 steps for any non-toy N*C -> megacore split
            in_specs=[
                pl.BlockSpec((blk, S), lambda i: (i, 0)),          # activation rows
                pl.BlockSpec(wm.shape, lambda i: (0, 0, 0)),       # packed conv weights (bf16)
                pl.BlockSpec(pv.shape, lambda i: (0, 0)),          # packed bias/BN params
            ],
            out_specs=pl.BlockSpec((blk, S), lambda i: (i, 0)),
        ),
        compiler_params=pltpu.CompilerParams(
            dimension_semantics=("parallel",),
            vmem_limit_bytes=vmem_limit),
    )(x2d, wm, pv)
    return out2d[:rows].reshape(N, C, H, W)


# ---------------------------------------------------------------------------
# Pure-JAX reference (correctness check of the kernel)
# ---------------------------------------------------------------------------
def reference_forward(x, params, dilated, eps=1e-3):
    hi = jax.lax.Precision.HIGHEST

    def conv(t, w, b, pad, dil):
        y = jax.lax.conv_general_dilated(
            t, w, window_strides=(1, 1), padding=pad, rhs_dilation=dil,
            dimension_numbers=("NCHW", "OIHW", "NCHW"), precision=hi)
        return y + b.reshape(1, -1, 1, 1)

    def bn(t, p):
        scale = p["gamma"] / jnp.sqrt(p["var"] + eps)
        shift = p["beta"] - p["mean"] * scale
        return t * scale.reshape(1, -1, 1, 1) + shift.reshape(1, -1, 1, 1)

    o = jax.nn.relu(conv(x, params["w1"], params["b1"], [(1, 1), (0, 0)], (1, 1)))
    o = jax.nn.relu(bn(conv(o, params["w2"], params["b2"], [(0, 0), (1, 1)], (1, 1)), params["bn1"]))
    o = jax.nn.relu(conv(o, params["w3"], params["b3"], [(dilated, dilated), (0, 0)], (dilated, 1)))
    o = bn(conv(o, params["w4"], params["b4"], [(0, 0), (dilated, dilated)], (1, dilated)), params["bn2"])
    return jax.nn.relu(o + x)


# ---------------------------------------------------------------------------
# Deterministic parameter init (shapes as in the PyTorch module __init__)
# ---------------------------------------------------------------------------
def init_params(key, C):
    ks = jax.random.split(key, 12)

    def conv_init(kw, kb, shape):
        cout, cin, kh, kww = shape
        bound = 1.0 / math.sqrt(cin * kh * kww)
        w = jax.random.uniform(kw, shape, jnp.float32, -bound, bound)
        b = jax.random.uniform(kb, (cout,), jnp.float32, -bound, bound)
        return w, b

    w1, b1 = conv_init(ks[0], ks[1], (C, C, 3, 1))
    w2, b2 = conv_init(ks[2], ks[3], (C, C, 1, 3))
    w3, b3 = conv_init(ks[4], ks[5], (C, C, 3, 1))
    w4, b4 = conv_init(ks[6], ks[7], (C, C, 1, 3))

    def bn_init(kg, kb):
        return dict(
            gamma=1.0 + 0.1 * jax.random.normal(kg, (C,), jnp.float32),
            beta=0.1 * jax.random.normal(kb, (C,), jnp.float32),
            mean=0.05 * jax.random.normal(jax.random.fold_in(kg, 1), (C,), jnp.float32),
            var=1.0 + 0.1 * jax.random.uniform(jax.random.fold_in(kb, 1), (C,), jnp.float32),
        )

    return dict(w1=w1, b1=b1, w2=w2, b2=b2, w3=w3, b3=b3, w4=w4, b4=b4,
                bn1=bn_init(ks[8], ks[9]), bn2=bn_init(ks[10], ks[11]))


if __name__ == "__main__":
    root = jax.random.PRNGKey(0)
    k_x, k_p = jax.random.split(root)

    N, C, H, W = 2, 4, 16, 16          # small NCHW input, like the PyTorch module
    dilated = 2
    drop_rate = 0.0                    # dropout branch is skipped (p == 0)

    x_nchw = jax.random.normal(k_x, (N, C, H, W), jnp.float32)
    params = init_params(k_p, C)

    out = non_bottleneck_1d_forward(x_nchw, params, dilated)
    out = jax.block_until_ready(out)

    ref = reference_forward(x_nchw, params, dilated)
    # Tolerance is sized for bf16 MXU operands (f32 accumulation) through four
    # chained convs; structural errors (taps/shifts/masks/BN/bias-fold) are
    # O(0.1-1) and would still be caught.
    np.testing.assert_allclose(np.asarray(out), np.asarray(ref), rtol=3e-2, atol=3e-2)

    print("KERNEL_OK")
</pallas_src>

<mosaic_0001>
module attributes {stable_mosaic.version = 11 : i64} {
  func.func @_nb1d_kernel(%arg0: i32, %arg1: memref<8x256xf32, #tpu.memory_space<vmem>>, %arg2: memref<4x8x24xbf16, #tpu.memory_space<vmem>>, %arg3: memref<8x8xf32, #tpu.memory_space<vmem>>, %arg4: memref<8x256xf32, #tpu.memory_space<vmem>>) attributes {dimension_semantics = [#tpu.dimension_semantics<parallel>], iteration_bounds = array<i64: 1>, scalar_prefetch = 0 : i64, scratch_operands = 0 : i64, tpu.core_type = #tpu.core_type<tc>, window_params = [{transform_indices = @transform_0, window_bounds = array<i64: 8, 256>}, {pipeline_mode = #tpu.pipeline_mode<synchronous>, transform_indices = @transform_1, window_bounds = array<i64: 4, 8, 24>}, {pipeline_mode = #tpu.pipeline_mode<synchronous>, transform_indices = @transform_2, window_bounds = array<i64: 8, 8>}, {transform_indices = @transform_3, window_bounds = array<i64: 8, 256>}]} {
    %c0 = arith.constant 0 : index
    %c0_0 = arith.constant 0 : index
    %0 = vector.load %arg1[%c0, %c0_0] : memref<8x256xf32, #tpu.memory_space<vmem>>, vector<8x256xf32>
    %1 = tpu.iota {dimensions = array<i32: 1>} : vector<1x256xi32>
    %c15_i32 = arith.constant 15 : i32
    %2 = vector.broadcast %c15_i32 : i32 to vector<1x256xi32>
    %3 = arith.andi %1, %2 : vector<1x256xi32>
    %c0_1 = arith.constant 0 : index
    %c0_2 = arith.constant 0 : index
    %c0_3 = arith.constant 0 : index
    %4 = vector.load %arg2[%c0_1, %c0_2, %c0_3] : memref<4x8x24xbf16, #tpu.memory_space<vmem>>, vector<1x8x24xbf16>
    %5 = vector.shape_cast %4 : vector<1x8x24xbf16> to vector<8x24xbf16>
    %c240_i32 = arith.constant 240 : i32
    %6 = tpu.dynamic_rotate %0 by %c240_i32 dim 1 : vector<8x256xf32>, i32 -> vector<8x256xf32>
    %c16_i32 = arith.constant 16 : i32
    %7 = tpu.dynamic_rotate %0 by %c16_i32 dim 1 : vector<8x256xf32>, i32 -> vector<8x256xf32>
    %c240_i32_4 = arith.constant 240 : i32
    %8 = vector.broadcast %c240_i32_4 : i32 to vector<1x256xi32>
    %9 = arith.cmpi slt, %1, %8 : vector<1x256xi32>
    %c16_i32_5 = arith.constant 16 : i32
    %10 = vector.broadcast %c16_i32_5 : i32 to vector<1x256xi32>
    %11 = arith.cmpi sge, %1, %10 : vector<1x256xi32>
    %cst = arith.constant 0.000000e+00 : f32
    %12 = vector.shape_cast %11 : vector<1x256xi1> to vector<1x256xi1>
    %13 = vector.broadcast %12 : vector<1x256xi1> to vector<8x256xi1>
    %14 = vector.broadcast %cst : f32 to vector<8x256xf32>
    %15 = arith.select %13, %7, %14 : vector<8x256xi1>, vector<8x256xf32>
    %cst_6 = arith.constant 0.000000e+00 : f32
    %16 = vector.shape_cast %9 : vector<1x256xi1> to vector<1x256xi1>
    %17 = vector.broadcast %16 : vector<1x256xi1> to vector<8x256xi1>
    %18 = vector.broadcast %cst_6 : f32 to vector<8x256xf32>
    %19 = arith.select %17, %6, %18 : vector<8x256xi1>, vector<8x256xf32>
    %20 = tpu.concatenate %15, %0, %19 in 0 : vector<8x256xf32>, vector<8x256xf32>, vector<8x256xf32> -> vector<24x256xf32>
    %21 = arith.truncf %20 : vector<24x256xf32> to vector<24x256xbf16>
    %cst_7 = arith.constant dense<0.000000e+00> : vector<8x256xf32>
    %22 = tpu.matmul %5, %21, %cst_7 {dimension_numbers = #tpu.dot_dimension_numbers<[1], [0], [0], [1], [0, 0, 1, 1], [], []>} : vector<8x24xbf16>, vector<24x256xbf16>, vector<8x256xf32> -> vector<8x256xf32>
    %c0_8 = arith.constant 0 : index
    %c0_9 = arith.constant 0 : index
    %23 = vector.load %arg3[%c0_8, %c0_9] : memref<8x8xf32, #tpu.memory_space<vmem>>, vector<8x1xf32>
    %24 = vector.broadcast %23 : vector<8x1xf32> to vector<8x256xf32>
    %25 = arith.addf %22, %24 : vector<8x256xf32>
    %cst_10 = arith.constant 0.000000e+00 : f32
    %26 = vector.broadcast %cst_10 : f32 to vector<8x256xf32>
    %27 = arith.maximumf %25, %26 : vector<8x256xf32>
    %c1 = arith.constant 1 : index
    %c0_11 = arith.constant 0 : index
    %c0_12 = arith.constant 0 : index
    %28 = vector.load %arg2[%c1, %c0_11, %c0_12] : memref<4x8x24xbf16, #tpu.memory_space<vmem>>, vector<1x8x24xbf16>
    %29 = vector.shape_cast %28 : vector<1x8x24xbf16> to vector<8x24xbf16>
    %c255_i32 = arith.constant 255 : i32
    %30 = tpu.dynamic_rotate %27 by %c255_i32 dim 1 : vector<8x256xf32>, i32 -> vector<8x256xf32>
    %c1_i32 = arith.constant 1 : i32
    %31 = tpu.dynamic_rotate %27 by %c1_i32 dim 1 : vector<8x256xf32>, i32 -> vector<8x256xf32>
    %c15_i32_13 = arith.constant 15 : i32
    %32 = vector.broadcast %c15_i32_13 : i32 to vector<1x256xi32>
    %33 = arith.cmpi slt, %3, %32 : vector<1x256xi32>
    %c1_i32_14 = arith.constant 1 : i32
    %34 = vector.broadcast %c1_i32_14 : i32 to vector<1x256xi32>
    %35 = arith.cmpi sge, %3, %34 : vector<1x256xi32>
    %cst_15 = arith.constant 0.000000e+00 : f32
    %36 = vector.shape_cast %35 : vector<1x256xi1> to vector<1x256xi1>
    %37 = vector.broadcast %36 : vector<1x256xi1> to vector<8x256xi1>
    %38 = vector.broadcast %cst_15 : f32 to vector<8x256xf32>
    %39 = arith.select %37, %31, %38 : vector<8x256xi1>, vector<8x256xf32>
    %cst_16 = arith.constant 0.000000e+00 : f32
    %40 = vector.shape_cast %33 : vector<1x256xi1> to vector<1x256xi1>
    %41 = vector.broadcast %40 : vector<1x256xi1> to vector<8x256xi1>
    %42 = vector.broadcast %cst_16 : f32 to vector<8x256xf32>
    %43 = arith.select %41, %30, %42 : vector<8x256xi1>, vector<8x256xf32>
    %44 = tpu.concatenate %39, %27, %43 in 0 : vector<8x256xf32>, vector<8x256xf32>, vector<8x256xf32> -> vector<24x256xf32>
    %45 = arith.truncf %44 : vector<24x256xf32> to vector<24x256xbf16>
    %cst_17 = arith.constant dense<0.000000e+00> : vector<8x256xf32>
    %46 = tpu.matmul %29, %45, %cst_17 {dimension_numbers = #tpu.dot_dimension_numbers<[1], [0], [0], [1], [0, 0, 1, 1], [], []>} : vector<8x24xbf16>, vector<24x256xbf16>, vector<8x256xf32> -> vector<8x256xf32>
    %c0_18 = arith.constant 0 : index
    %c2 = arith.constant 2 : index
    %47 = vector.load %arg3[%c0_18, %c2] : memref<8x8xf32, #tpu.memory_space<vmem>>, vector<8x1xf32>
    %48 = vector.broadcast %47 : vector<8x1xf32> to vector<8x256xf32>
    %49 = arith.mulf %46, %48 : vector<8x256xf32>
    %c0_19 = arith.constant 0 : index
    %c3 = arith.constant 3 : index
    %50 = vector.load %arg3[%c0_19, %c3] : memref<8x8xf32, #tpu.memory_space<vmem>>, vector<8x1xf32>
    %51 = vector.broadcast %50 : vector<8x1xf32> to vector<8x256xf32>
    %52 = arith.addf %49, %51 : vector<8x256xf32>
    %cst_20 = arith.constant 0.000000e+00 : f32
    %53 = vector.broadcast %cst_20 : f32 to vector<8x256xf32>
    %54 = arith.maximumf %52, %53 : vector<8x256xf32>
    %c2_21 = arith.constant 2 : index
    %c0_22 = arith.constant 0 : index
    %c0_23 = arith.constant 0 : index
    %55 = vector.load %arg2[%c2_21, %c0_22, %c0_23] : memref<4x8x24xbf16, #tpu.memory_space<vmem>>, vector<1x8x24xbf16>
    %56 = vector.shape_cast %55 : vector<1x8x24xbf16> to vector<8x24xbf16>
    %c224_i32 = arith.constant 224 : i32
    %57 = tpu.dynamic_rotate %54 by %c224_i32 dim 1 : vector<8x256xf32>, i32 -> vector<8x256xf32>
    %c32_i32 = arith.constant 32 : i32
    %58 = tpu.dynamic_rotate %54 by %c32_i32 dim 1 : vector<8x256xf32>, i32 -> vector<8x256xf32>
    %c224_i32_24 = arith.constant 224 : i32
    %59 = vector.broadcast %c224_i32_24 : i32 to vector<1x256xi32>
    %60 = arith.cmpi slt, %1, %59 : vector<1x256xi32>
    %c32_i32_25 = arith.constant 32 : i32
    %61 = vector.broadcast %c32_i32_25 : i32 to vector<1x256xi32>
    %62 = arith.cmpi sge, %1, %61 : vector<1x256xi32>
    %cst_26 = arith.constant 0.000000e+00 : f32
    %63 = vector.shape_cast %62 : vector<1x256xi1> to vector<1x256xi1>
    %64 = vector.broadcast %63 : vector<1x256xi1> to vector<8x256xi1>
    %65 = vector.broadcast %cst_26 : f32 to vector<8x256xf32>
    %66 = arith.select %64, %58, %65 : vector<8x256xi1>, vector<8x256xf32>
    %cst_27 = arith.constant 0.000000e+00 : f32
    %67 = vector.shape_cast %60 : vector<1x256xi1> to vector<1x256xi1>
    %68 = vector.broadcast %67 : vector<1x256xi1> to vector<8x256xi1>
    %69 = vector.broadcast %cst_27 : f32 to vector<8x256xf32>
    %70 = arith.select %68, %57, %69 : vector<8x256xi1>, vector<8x256xf32>
    %71 = tpu.concatenate %66, %54, %70 in 0 : vector<8x256xf32>, vector<8x256xf32>, vector<8x256xf32> -> vector<24x256xf32>
    %72 = arith.truncf %71 : vector<24x256xf32> to vector<24x256xbf16>
    %cst_28 = arith.constant dense<0.000000e+00> : vector<8x256xf32>
    %73 = tpu.matmul %56, %72, %cst_28 {dimension_numbers = #tpu.dot_dimension_numbers<[1], [0], [0], [1], [0, 0, 1, 1], [], []>} : vector<8x24xbf16>, vector<24x256xbf16>, vector<8x256xf32> -> vector<8x256xf32>
    %c0_29 = arith.constant 0 : index
    %c1_30 = arith.constant 1 : index
    %74 = vector.load %arg3[%c0_29, %c1_30] : memref<8x8xf32, #tpu.memory_space<vmem>>, vector<8x1xf32>
    %75 = vector.broadcast %74 : vector<8x1xf32> to vector<8x256xf32>
    %76 = arith.addf %73, %75 : vector<8x256xf32>
    %cst_31 = arith.constant 0.000000e+00 : f32
    %77 = vector.broadcast %cst_31 : f32 to vector<8x256xf32>
    %78 = arith.maximumf %76, %77 : vector<8x256xf32>
    %c3_32 = arith.constant 3 : index
    %c0_33 = arith.constant 0 : index
    %c0_34 = arith.constant 0 : index
    %79 = vector.load %arg2[%c3_32, %c0_33, %c0_34] : memref<4x8x24xbf16, #tpu.memory_space<vmem>>, vector<1x8x24xbf16>
    %80 = vector.shape_cast %79 : vector<1x8x24xbf16> to vector<8x24xbf16>
    %c254_i32 = arith.constant 254 : i32
    %81 = tpu.dynamic_rotate %78 by %c254_i32 dim 1 : vector<8x256xf32>, i32 -> vector<8x256xf32>
    %c2_i32 = arith.constant 2 : i32
    %82 = tpu.dynamic_rotate %78 by %c2_i32 dim 1 : vector<8x256xf32>, i32 -> vector<8x256xf32>
    %c14_i32 = arith.constant 14 : i32
    %83 = vector.broadcast %c14_i32 : i32 to vector<1x256xi32>
    %84 = arith.cmpi slt, %3, %83 : vector<1x256xi32>
    %c2_i32_35 = arith.constant 2 : i32
    %85 = vector.broadcast %c2_i32_35 : i32 to vector<1x256xi32>
    %86 = arith.cmpi sge, %3, %85 : vector<1x256xi32>
    %cst_36 = arith.constant 0.000000e+00 : f32
    %87 = vector.shape_cast %86 : vector<1x256xi1> to vector<1x256xi1>
    %88 = vector.broadcast %87 : vector<1x256xi1> to vector<8x256xi1>
    %89 = vector.broadcast %cst_36 : f32 to vector<8x256xf32>
    %90 = arith.select %88, %82, %89 : vector<8x256xi1>, vector<8x256xf32>
    %cst_37 = arith.constant 0.000000e+00 : f32
    %91 = vector.shape_cast %84 : vector<1x256xi1> to vector<1x256xi1>
    %92 = vector.broadcast %91 : vector<1x256xi1> to vector<8x256xi1>
    %93 = vector.broadcast %cst_37 : f32 to vector<8x256xf32>
    %94 = arith.select %92, %81, %93 : vector<8x256xi1>, vector<8x256xf32>
    %95 = tpu.concatenate %90, %78, %94 in 0 : vector<8x256xf32>, vector<8x256xf32>, vector<8x256xf32> -> vector<24x256xf32>
    %96 = arith.truncf %95 : vector<24x256xf32> to vector<24x256xbf16>
    %cst_38 = arith.constant dense<0.000000e+00> : vector<8x256xf32>
    %97 = tpu.matmul %80, %96, %cst_38 {dimension_numbers = #tpu.dot_dimension_numbers<[1], [0], [0], [1], [0, 0, 1, 1], [], []>} : vector<8x24xbf16>, vector<24x256xbf16>, vector<8x256xf32> -> vector<8x256xf32>
    %c0_39 = arith.constant 0 : index
    %c4 = arith.constant 4 : index
    %98 = vector.load %arg3[%c0_39, %c4] : memref<8x8xf32, #tpu.memory_space<vmem>>, vector<8x1xf32>
    %99 = vector.broadcast %98 : vector<8x1xf32> to vector<8x256xf32>
    %100 = arith.mulf %97, %99 : vector<8x256xf32>
    %c0_40 = arith.constant 0 : index
    %c5 = arith.constant 5 : index
    %101 = vector.load %arg3[%c0_40, %c5] : memref<8x8xf32, #tpu.memory_space<vmem>>, vector<8x1xf32>
    %102 = vector.broadcast %101 : vector<8x1xf32> to vector<8x256xf32>
    %103 = arith.addf %100, %102 : vector<8x256xf32>
    %104 = arith.addf %103, %0 : vector<8x256xf32>
    %cst_41 = arith.constant 0.000000e+00 : f32
    %105 = vector.broadcast %cst_41 : f32 to vector<8x256xf32>
    %106 = arith.maximumf %104, %105 : vector<8x256xf32>
    %c0_42 = arith.constant 0 : index
    %c0_43 = arith.constant 0 : index
    %107 = vector.load %arg4[%c0_42, %c0_43] : memref<8x256xf32, #tpu.memory_space<vmem>>, vector<8x256xf32>
    tpu.vector_store %arg4[%c0_42, %c0_43], %106 {strides = array<i32>} : memref<8x256xf32, #tpu.memory_space<vmem>>, vector<8x256xf32>,
    return
  }
  func.func @transform_0(%arg0: i32) -> (i32, i32) {
    %c0_i32 = arith.constant 0 : i32
    %c0_i32_0 = arith.constant 0 : i32
    return %arg0, %c0_i32 : i32, i32
  }
  func.func @transform_1(%arg0: i32) -> (i32, i32, i32) {
    %c0_i32 = arith.constant 0 : i32
    %c0_i32_0 = arith.constant 0 : i32
    %c0_i32_1 = arith.constant 0 : i32
    %c0_i32_2 = arith.constant 0 : i32
    return %c0_i32, %c0_i32_0, %c0_i32_1 : i32, i32, i32
  }
  func.func @transform_2(%arg0: i32) -> (i32, i32) {
    %c0_i32 = arith.constant 0 : i32
    %c0_i32_0 = arith.constant 0 : i32
    %c0_i32_1 = arith.constant 0 : i32
    return %c0_i32, %c0_i32_0 : i32, i32
  }
  func.func @transform_3(%arg0: i32) -> (i32, i32) {
    %c0_i32 = arith.constant 0 : i32
    %c0_i32_0 = arith.constant 0 : i32
    return %arg0, %c0_i32 : i32, i32
  }
}

</mosaic_0001>

<llo_original>
// kernel: tpu_custom_call.1
$region0: #{tpu_custom_call.1}
  #allocation0 [shape = 'u32[]', space=smem, size = 0x4, offset = 0x4, fixed_abs, tag = 'smem constant byte address 0x4 - core index']
  #allocation1 [shape = 'u32[144,128]{1,0:T(1,128)}', space=vmem, size = 0x12000, scoped, tag = 'internal scratch']
  %s0 = inlined_call_operand.hbm [shape: f32[8,256], index: 0, kind: input, shape index: {}]
  %s1 = inlined_call_operand.hbm [shape: bf16[4,8,24], index: 1, kind: input, shape index: {}]
  %s2 = inlined_call_operand.hbm [shape: f32[8,8], index: 2, kind: input, shape index: {}]
  %s3 = inlined_call_operand.hbm [shape: f32[8,256], index: 3, kind: output, shape index: {}]
  %s4 = sld [smem:[#allocation0]]
  $region34: #{tpu_custom_call.1} parent=0
    _
  %s6 = ssub.s32 1, %s4
  %s7 = scalar_select 0, %s6, %s4
  $region1: #{tpu_custom_call.1} parent=0
    #allocation2 [shape = 'u8[8192]{0}', space=vmem, size = 0x2000, scoped, tag = 'input window, operand 0, single buffered']
    #allocation3 [shape = 's32[1]{0}', space=sflag, size = 0x4, scoped, tag = 'scoped memory for tpu_custom_call.1']
    #allocation4 [shape = 's32[1]{0}', space=sflag, size = 0x4, scoped, tag = 'scoped memory for tpu_custom_call.1']
    #allocation5 [shape = 'u8[8192]{0}', space=vmem, size = 0x2000, scoped, tag = 'input window, operand 1, single buffered']
    #allocation6 [shape = 's32[1]{0}', space=sflag, size = 0x4, scoped, tag = 'scoped memory for tpu_custom_call.1']
    #allocation7 [shape = 'u8[4096]{0}', space=vmem, size = 0x1000, scoped, tag = 'input window, operand 2, single buffered']
    #allocation8 [shape = 'u8[8192]{0}', space=vmem, size = 0x2000, scoped, tag = 'output window, operand 0, single buffered']
    %8 = vsyncpa [#allocation3], 0
    %9 = vsyncpa [#allocation6], 0
    %10 = vsyncpa [#allocation4], 0
    // Predicated region
    $region2: #{tpu_custom_call.1} parent=1 // pred_check
      _
    $region3: #{tpu_custom_call.1} parent=1 // pred_check_branch
      %12 = sbr.rel (0) target = $region5
    $region4: #{tpu_custom_call.1} parent=1 // pred_region
      %s14 = ssub.s32 256, 256
      %15 = vsyncadd [#allocation3], %s14
      %s17 = sshll.u32 [#allocation2], 4
      %s18 = int_to_ptr.vmem [resolvable:$true] %s17
      %20 = dma.hbm_to_vmem [thread:$0]  %s0, 256, %s18, [#allocation3]
    $region5: #{tpu_custom_call.1} parent=1 // pred_fallthru
      _
    // Predicated region
    $region6: #{tpu_custom_call.1} parent=1 // pred_check
      _
    $region7: #{tpu_custom_call.1} parent=1 // pred_check_branch
      %22 = sbr.rel (0) target = $region9
    $region8: #{tpu_custom_call.1} parent=1 // pred_region
      %s24 = ssub.s32 256, 256
      %25 = vsyncadd [#allocation6], %s24
      %s26 = sshll.u32 [#allocation5], 4
      %s27 = int_to_ptr.vmem [resolvable:$true] %s26
      %32 = dma.hbm_to_vmem [thread:$0]  %s1, 256, %s27, [#allocation6], 64, 64, 4
    $region9: #{tpu_custom_call.1} parent=1 // pred_fallthru
      _
    // Predicated region
    $region10: #{tpu_custom_call.1} parent=1 // pred_check
      _
    $region11: #{tpu_custom_call.1} parent=1 // pred_check_branch
      %34 = sbr.rel (0) target = $region13
    $region12: #{tpu_custom_call.1} parent=1 // pred_region
      %s36 = ssub.s32 128, 128
      %37 = vsyncadd [#allocation6], %s36
      %s39 = sshll.u32 [#allocation7], 4
      %s40 = int_to_ptr.vmem [resolvable:$true] %s39
      %42 = dma.hbm_to_vmem [thread:$0]  %s2, 128, %s40, [#allocation6]
    $region13: #{tpu_custom_call.1} parent=1 // pred_fallthru
      _
    // Predicated region
    $region14: #{tpu_custom_call.1} parent=1 // pred_check
      _
    $region15: #{tpu_custom_call.1} parent=1 // pred_check_branch
      %44 = sbr.rel (0) target = $region17
    $region16: #{tpu_custom_call.1} parent=1 // pred_region
      %45 = dma.done [#allocation3], 256
    $region17: #{tpu_custom_call.1} parent=1 // pred_fallthru
      _
    // Predicated region
    $region18: #{tpu_custom_call.1} parent=1 // pred_check
      _
    $region19: #{tpu_custom_call.1} parent=1 // pred_check_branch
      %47 = sbr.rel (0) target = $region21
    $region20: #{tpu_custom_call.1} parent=1 // pred_region
      %48 = dma.done [#allocation6], 256
    $region21: #{tpu_custom_call.1} parent=1 // pred_fallthru
      _
    // Predicated region
    $region22: #{tpu_custom_call.1} parent=1 // pred_check
      _
    $region23: #{tpu_custom_call.1} parent=1 // pred_check_branch
      %50 = sbr.rel (0) target = $region25
    $region24: #{tpu_custom_call.1} parent=1 // pred_region
      %51 = dma.done [#allocation6], 128
    $region25: #{tpu_custom_call.1} parent=1 // pred_fallthru
      _
    %v53 = vld [vmem:[#allocation2] sm:$0xff]
    %v54 = vld [vmem:[#allocation2 + $0x8] sm:$0xff]
    %v55 = vlaneseq
    %v56 = vand.u32 %v55, 127
    %v57 = vadd.s32 %v56, 128
    %v58 = vand.u32 %v56, 15
    %v59 = vand.u32 %v57, 15
    %v60 = vld [vmem:[#allocation5] sm:$0xf]
    %61 = vrot.lane.b32.xlu0 %v53, 112
    %v62 = vpop.permute.xlu0 %61
    %63 = vrot.lane.b32.xlu0 %v54, 112
    %v64 = vpop.permute.xlu0 %63
    %vm65 = vcmp.lt.s32.totalorder %v56, 112
    %v66 = vsel %vm65, %v62, %v64
    %v67 = vsel %vm65, %v64, %v62
    %68 = vrot.lane.b32.xlu0 %v53, 16
    %v69 = vpop.permute.xlu0 %68
    %70 = vrot.lane.b32.xlu0 %v54, 16
    %v71 = vpop.permute.xlu0 %70
    %vm72 = vcmp.lt.s32.totalorder %v56, 16
    %v73 = vsel %vm72, %v69, %v71
    %v74 = vsel %vm72, %v71, %v69
    %vm75 = vcmp.lt.s32.totalorder %v56, 240
    %vm76 = vcmp.lt.s32.totalorder %v57, 240
    %vm77 = vcmp.ge.s32.totalorder %v56, 16
    %vm78 = vcmp.ge.s32.totalorder %v57, 16
    %v79 = vsel %vm77, 1, 0
    %v80 = vsel %vm78, 1, 0
    %vm81 = vcmp.eq.s32.totalorder %v79, 1
    %vm82 = vcmp.eq.s32.totalorder %v80, 1
    %v83 = vsel %vm81, %v74, 0.0
    %v84 = vsel %vm82, %v73, 0.0
    %v85 = vsel %vm75, 1, 0
    %v86 = vsel %vm76, 1, 0
    %vm87 = vcmp.eq.s32.totalorder %v85, 1
    %vm88 = vcmp.eq.s32.totalorder %v86, 1
    %v89 = vsel %vm87, %v66, 0.0
    %v90 = vsel %vm88, %v67, 0.0
    %v91 = vpack.c.bf16 %v53, %v83
    %v92 = vpack.c.bf16 %v54, %v84
    %v93 = vpack.c.bf16 %v89, %v89
    %v94 = vpack.c.bf16 %v90, %v90
    %v95 = vld [vmem:[#allocation7] sm:$0xff]
    %97 = vset.pattern.permute.xlu0 0
    %98 = vperm.xlu0 %97, %v95
    %v99 = vpop.permute.xlu0 %98
    %vm101 = vcmask 195584
    %v103 = vsel %vm101, %v60, 0
    %vm105 = vcmask 1043456
    %v107 = vsel %vm105, %v93, 0
    %v110 = vsel %vm105, %v94, 0
    %112 = vmatprep.subr.bf16.mxu0 0
    %113 = vmatpush1.bf16.msra.mxu0 0
    %114 = vmatprep.subr.bf16.mxu0 0
    %115 = vmatpush1.bf16.msra.mxu0 0
    %116 = vmatprep.subr.bf16.mxu0 0
    %117 = vmatpush1.bf16.msra.mxu0 0
    %118 = vmatprep.subr.bf16.mxu0 0
    %119 = vmatpush1.bf16.msra.mxu0 0
    %120 = vmatprep.subr.bf16.mxu0 0
    %121 = vmatpush1.bf16.msra.mxu0 0
    %122 = vmatprep.subr.bf16.mxu0 0
    %123 = vmatpush1.bf16.msra.mxu0 0
    %124 = vmatprep.subr.bf16.mxu0 %v110
    %125 = vmatpush1.bf16.msra.mxu0 %v107
    %126 = vmatprep.subr.bf16.mxu0 %v92
    %127 = vmatpush1.bf16.msra.mxu0 %v91
    %128 = vmatprep.subr.bf16.mxu0 0
    %129 = vmatpush2.bf16.msra.mxu0 0
    %130 = vmatprep.subr.bf16.mxu0 0
    %131 = vmatpush2.bf16.msra.mxu0 0
    %132 = vmatprep.subr.bf16.mxu0 0
    %133 = vmatpush2.bf16.msra.mxu0 0
    %134 = vmatprep.subr.bf16.mxu0 0
    %135 = vmatpush2.bf16.msra.mxu0 0
    %136 = vmatprep.subr.bf16.mxu0 0
    %137 = vmatpush2.bf16.msra.mxu0 0
    %138 = vmatprep.subr.bf16.mxu0 0
    %139 = vmatpush2.bf16.msra.mxu0 0
    %140 = vmatprep.subr.bf16.mxu0 0
    %141 = vmatpush2.bf16.msra.mxu0 0
    %142 = vmatprep.subr.bf16.mxu0 0
    %143 = vmatpush2.bf16.msra.mxu0 0
    %144 = vmatprep.mubr.bf16.mxu0 0
    %145 = vmatmul.mubr.bf16.gmra.mxu0 %v103
    %v146 = vpop.f32.mrf.mxu0
    %v147 = vadd.f32 %v99, %v146
    %v148 = vpop.f32.mrf.mxu0
    %v149 = vadd.f32 %v99, %v148
    %v150 = vpop.f32.mrf.mxu0
    %v151 = vpop.f32.mrf.mxu0
    %152 = vdwg.mxu0
    %v153 = vmax.f32 %v147, 0.0
    %v154 = vmax.f32 %v149, 0.0
    %s155 = scalar_lea.vmem [#allocation5], 4
    %v156 = vld [vmem:[%s155] sm:$0xf]
    %157 = vrot.lane.b32.xlu0 %v153, 127
    %v158 = vpop.permute.xlu0 %157
    %159 = vrot.lane.b32.xlu0 %v154, 127
    %v160 = vpop.permute.xlu0 %159
    %vm161 = vcmp.lt.s32.totalorder %v56, 127
    %v162 = vsel %vm161, %v158, %v160
    %v163 = vsel %vm161, %v160, %v158
    %164 = vrot.lane.b32.xlu0 %v153, 1
    %v165 = vpop.permute.xlu0 %164
    %166 = vrot.lane.b32.xlu0 %v154, 1
    %v167 = vpop.permute.xlu0 %166
    %vm168 = vcmp.lt.s32.totalorder %v56, 1
    %v169 = vsel %vm168, %v165, %v167
    %v170 = vsel %vm168, %v167, %v165
    %vm171 = vcmp.lt.s32.totalorder %v58, 15
    %vm172 = vcmp.lt.s32.totalorder %v59, 15
    %vm173 = vcmp.ge.s32.totalorder %v58, 1
    %vm174 = vcmp.ge.s32.totalorder %v59, 1
    %v175 = vsel %vm173, 1, 0
    %v176 = vsel %vm174, 1, 0
    %vm177 = vcmp.eq.s32.totalorder %v175, 1
    %vm178 = vcmp.eq.s32.totalorder %v176, 1
    %v179 = vsel %vm177, %v170, 0.0
    %v180 = vsel %vm178, %v169, 0.0
    %v181 = vsel %vm171, 1, 0
    %v182 = vsel %vm172, 1, 0
    %vm183 = vcmp.eq.s32.totalorder %v181, 1
    %vm184 = vcmp.eq.s32.totalorder %v182, 1
    %v185 = vsel %vm183, %v162, 0.0
    %v186 = vsel %vm184, %v163, 0.0
    %v187 = vpack.c.bf16 %v153, %v179
    %v188 = vpack.c.bf16 %v154, %v180
    %v189 = vpack.c.bf16 %v185, %v185
    %v190 = vpack.c.bf16 %v186, %v186
    %v192 = vsel %vm101, %v156, 0
    %v195 = vsel %vm105, %v189, 0
    %v198 = vsel %vm105, %v190, 0
    %200 = vmatprep.subr.bf16.mxu0 0
    %201 = vmatpush1.bf16.msra.mxu0 0
    %202 = vmatprep.subr.bf16.mxu0 0
    %203 = vmatpush1.bf16.msra.mxu0 0
    %204 = vmatprep.subr.bf16.mxu0 0
    %205 = vmatpush1.bf16.msra.mxu0 0
    %206 = vmatprep.subr.bf16.mxu0 0
    %207 = vmatpush1.bf16.msra.mxu0 0
    %208 = vmatprep.subr.bf16.mxu0 0
    %209 = vmatpush1.bf16.msra.mxu0 0
    %210 = vmatprep.subr.bf16.mxu0 0
    %211 = vmatpush1.bf16.msra.mxu0 0
    %212 = vmatprep.subr.bf16.mxu0 %v198
    %213 = vmatpush1.bf16.msra.mxu0 %v195
    %214 = vmatprep.subr.bf16.mxu0 %v188
    %215 = vmatpush1.bf16.msra.mxu0 %v187
    %216 = vmatprep.subr.bf16.mxu0 0
    %217 = vmatpush2.bf16.msra.mxu0 0
    %218 = vmatprep.subr.bf16.mxu0 0
    %219 = vmatpush2.bf16.msra.mxu0 0
    %220 = vmatprep.subr.bf16.mxu0 0
    %221 = vmatpush2.bf16.msra.mxu0 0
    %222 = vmatprep.subr.bf16.mxu0 0
    %223 = vmatpush2.bf16.msra.mxu0 0
    %224 = vmatprep.subr.bf16.mxu0 0
    %225 = vmatpush2.bf16.msra.mxu0 0
    %226 = vmatprep.subr.bf16.mxu0 0
    %227 = vmatpush2.bf16.msra.mxu0 0
    %228 = vmatprep.subr.bf16.mxu0 0
    %229 = vmatpush2.bf16.msra.mxu0 0
    %230 = vmatprep.subr.bf16.mxu0 0
    %231 = vmatpush2.bf16.msra.mxu0 0
    %232 = vmatprep.mubr.bf16.mxu0 0
    %233 = vmatmul.mubr.bf16.gmra.mxu0 %v192
    %v234 = vpop.f32.mrf.mxu0
    %v235 = vadd.f32 0.0, %v234
    %v236 = vpop.f32.mrf.mxu0
    %v237 = vadd.f32 0.0, %v236
    %v238 = vpop.f32.mrf.mxu0
    %v239 = vpop.f32.mrf.mxu0
    %240 = vdwg.mxu0
    %241 = vset.pattern.permute.xlu0 2
    %242 = vperm.xlu0 %241, %v95
    %v243 = vpop.permute.xlu0 %242
    %v245 = vmul.f32 %v235, %v243
    %v246 = vmul.f32 %v237, %v243
    %247 = vset.pattern.permute.xlu0 3
    %248 = vperm.xlu0 %247, %v95
    %v249 = vpop.permute.xlu0 %248
    %v251 = vadd.f32 %v245, %v249
    %v252 = vadd.f32 %v246, %v249
    %v253 = vmax.f32 %v251, 0.0
    %v254 = vmax.f32 %v252, 0.0
    %s255 = scalar_lea.vmem [#allocation5], 8
    %v256 = vld [vmem:[%s255] sm:$0xf]
    %257 = vrot.lane.b32.xlu0 %v253, 96
    %v258 = vpop.permute.xlu0 %257
    %259 = vrot.lane.b32.xlu0 %v254, 96
    %v260 = vpop.permute.xlu0 %259
    %vm261 = vcmp.lt.s32.totalorder %v56, 96
    %v262 = vsel %vm261, %v258, %v260
    %v263 = vsel %vm261, %v260, %v258
    %264 = vrot.lane.b32.xlu0 %v253, 32
    %v265 = vpop.permute.xlu0 %264
    %266 = vrot.lane.b32.xlu0 %v254, 32
    %v267 = vpop.permute.xlu0 %266
    %vm268 = vcmp.lt.s32.totalorder %v56, 32
    %v269 = vsel %vm268, %v265, %v267
    %v270 = vsel %vm268, %v267, %v265
    %vm271 = vcmp.lt.s32.totalorder %v56, 224
    %vm272 = vcmp.lt.s32.totalorder %v57, 224
    %vm273 = vcmp.ge.s32.totalorder %v56, 32
    %vm274 = vcmp.ge.s32.totalorder %v57, 32
    %v275 = vsel %vm273, 1, 0
    %v276 = vsel %vm274, 1, 0
    %vm277 = vcmp.eq.s32.totalorder %v275, 1
    %vm278 = vcmp.eq.s32.totalorder %v276, 1
    %v279 = vsel %vm277, %v270, 0.0
    %v280 = vsel %vm278, %v269, 0.0
    %v281 = vsel %vm271, 1, 0
    %v282 = vsel %vm272, 1, 0
    %vm283 = vcmp.eq.s32.totalorder %v281, 1
    %vm284 = vcmp.eq.s32.totalorder %v282, 1
    %v285 = vsel %vm283, %v262, 0.0
    %v286 = vsel %vm284, %v263, 0.0
    %v287 = vpack.c.bf16 %v253, %v279
    %v288 = vpack.c.bf16 %v254, %v280
    %v289 = vpack.c.bf16 %v285, %v285
    %v290 = vpack.c.bf16 %v286, %v286
    %291 = vset.pattern.permute.xlu0 1
    %292 = vperm.xlu0 %291, %v95
    %v293 = vpop.permute.xlu0 %292
    %v296 = vsel %vm101, %v256, 0
    %v299 = vsel %vm105, %v289, 0
    %v302 = vsel %vm105, %v290, 0
    %304 = vmatprep.subr.bf16.mxu0 0
    %305 = vmatpush1.bf16.msra.mxu0 0
    %306 = vmatprep.subr.bf16.mxu0 0
    %307 = vmatpush1.bf16.msra.mxu0 0
    %308 = vmatprep.subr.bf16.mxu0 0
    %309 = vmatpush1.bf16.msra.mxu0 0
    %310 = vmatprep.subr.bf16.mxu0 0
    %311 = vmatpush1.bf16.msra.mxu0 0
    %312 = vmatprep.subr.bf16.mxu0 0
    %313 = vmatpush1.bf16.msra.mxu0 0
    %314 = vmatprep.subr.bf16.mxu0 0
    %315 = vmatpush1.bf16.msra.mxu0 0
    %316 = vmatprep.subr.bf16.mxu0 %v302
    %317 = vmatpush1.bf16.msra.mxu0 %v299
    %318 = vmatprep.subr.bf16.mxu0 %v288
    %319 = vmatpush1.bf16.msra.mxu0 %v287
    %320 = vmatprep.subr.bf16.mxu0 0
    %321 = vmatpush2.bf16.msra.mxu0 0
    %322 = vmatprep.subr.bf16.mxu0 0
    %323 = vmatpush2.bf16.msra.mxu0 0
    %324 = vmatprep.subr.bf16.mxu0 0
    %325 = vmatpush2.bf16.msra.mxu0 0
    %326 = vmatprep.subr.bf16.mxu0 0
    %327 = vmatpush2.bf16.msra.mxu0 0
    %328 = vmatprep.subr.bf16.mxu0 0
    %329 = vmatpush2.bf16.msra.mxu0 0
    %330 = vmatprep.subr.bf16.mxu0 0
    %331 = vmatpush2.bf16.msra.mxu0 0
    %332 = vmatprep.subr.bf16.mxu0 0
    %333 = vmatpush2.bf16.msra.mxu0 0
    %334 = vmatprep.subr.bf16.mxu0 0
    %335 = vmatpush2.bf16.msra.mxu0 0
    %336 = vmatprep.mubr.bf16.mxu0 0
    %337 = vmatmul.mubr.bf16.gmra.mxu0 %v296
    %v338 = vpop.f32.mrf.mxu0
    %v339 = vadd.f32 %v293, %v338
    %v340 = vpop.f32.mrf.mxu0
    %v341 = vadd.f32 %v293, %v340
    %v342 = vpop.f32.mrf.mxu0
    %v343 = vpop.f32.mrf.mxu0
    %344 = vdwg.mxu0
    %v345 = vmax.f32 %v339, 0.0
    %v346 = vmax.f32 %v341, 0.0
    %s347 = scalar_lea.vmem [#allocation5], 12
    %v348 = vld [vmem:[%s347] sm:$0xf]
    %349 = vrot.lane.b32.xlu0 %v345, 126
    %v350 = vpop.permute.xlu0 %349
    %351 = vrot.lane.b32.xlu0 %v346, 126
    %v352 = vpop.permute.xlu0 %351
    %vm353 = vcmp.lt.s32.totalorder %v56, 126
    %v354 = vsel %vm353, %v350, %v352
    %v355 = vsel %vm353, %v352, %v350
    %356 = vrot.lane.b32.xlu0 %v345, 2
    %v357 = vpop.permute.xlu0 %356
    %358 = vrot.lane.b32.xlu0 %v346, 2
    %v359 = vpop.permute.xlu0 %358
    %vm360 = vcmp.lt.s32.totalorder %v56, 2
    %v361 = vsel %vm360, %v357, %v359
    %v362 = vsel %vm360, %v359, %v357
    %vm363 = vcmp.lt.s32.totalorder %v58, 14
    %vm364 = vcmp.lt.s32.totalorder %v59, 14
    %vm365 = vcmp.ge.s32.totalorder %v58, 2
    %vm366 = vcmp.ge.s32.totalorder %v59, 2
    %v367 = vsel %vm365, 1, 0
    %v368 = vsel %vm366, 1, 0
    %vm369 = vcmp.eq.s32.totalorder %v367, 1
    %vm370 = vcmp.eq.s32.totalorder %v368, 1
    %v371 = vsel %vm369, %v362, 0.0
    %v372 = vsel %vm370, %v361, 0.0
    %v373 = vsel %vm363, 1, 0
    %v374 = vsel %vm364, 1, 0
    %vm375 = vcmp.eq.s32.totalorder %v373, 1
    %vm376 = vcmp.eq.s32.totalorder %v374, 1
    %v377 = vsel %vm375, %v354, 0.0
    %v378 = vsel %vm376, %v355, 0.0
    %v379 = vpack.c.bf16 %v345, %v371
    %v380 = vpack.c.bf16 %v346, %v372
    %v381 = vpack.c.bf16 %v377, %v377
    %v382 = vpack.c.bf16 %v378, %v378
    %v384 = vsel %vm101, %v348, 0
    %v387 = vsel %vm105, %v381, 0
    %v390 = vsel %vm105, %v382, 0
    %392 = vmatprep.subr.bf16.mxu0 0
    %393 = vmatpush1.bf16.msra.mxu0 0
    %394 = vmatprep.subr.bf16.mxu0 0
    %395 = vmatpush1.bf16.msra.mxu0 0
    %396 = vmatprep.subr.bf16.mxu0 0
    %397 = vmatpush1.bf16.msra.mxu0 0
    %398 = vmatprep.subr.bf16.mxu0 0
    %399 = vmatpush1.bf16.msra.mxu0 0
    %400 = vmatprep.subr.bf16.mxu0 0
    %401 = vmatpush1.bf16.msra.mxu0 0
    %402 = vmatprep.subr.bf16.mxu0 0
    %403 = vmatpush1.bf16.msra.mxu0 0
    %404 = vmatprep.subr.bf16.mxu0 %v390
    %405 = vmatpush1.bf16.msra.mxu0 %v387
    %406 = vmatprep.subr.bf16.mxu0 %v380
    %407 = vmatpush1.bf16.msra.mxu0 %v379
    %408 = vmatprep.subr.bf16.mxu0 0
    %409 = vmatpush2.bf16.msra.mxu0 0
    %410 = vmatprep.subr.bf16.mxu0 0
    %411 = vmatpush2.bf16.msra.mxu0 0
    %412 = vmatprep.subr.bf16.mxu0 0
    %413 = vmatpush2.bf16.msra.mxu0 0
    %414 = vmatprep.subr.bf16.mxu0 0
    %415 = vmatpush2.bf16.msra.mxu0 0
    %416 = vmatprep.subr.bf16.mxu0 0
    %417 = vmatpush2.bf16.msra.mxu0 0
    %418 = vmatprep.subr.bf16.mxu0 0
    %419 = vmatpush2.bf16.msra.mxu0 0
    %420 = vmatprep.subr.bf16.mxu0 0
    %421 = vmatpush2.bf16.msra.mxu0 0
    %422 = vmatprep.subr.bf16.mxu0 0
    %423 = vmatpush2.bf16.msra.mxu0 0
    %424 = vmatprep.mubr.bf16.mxu0 0
    %425 = vmatmul.mubr.bf16.gmra.mxu0 %v384
    %v426 = vpop.f32.mrf.mxu0
    %v427 = vadd.f32 0.0, %v426
    %v428 = vpop.f32.mrf.mxu0
    %v429 = vadd.f32 0.0, %v428
    %v430 = vpop.f32.mrf.mxu0
    %v431 = vpop.f32.mrf.mxu0
    %432 = vdwg.mxu0
    %433 = vset.pattern.permute.xlu0 4
    %434 = vperm.xlu0 %433, %v95
    %v435 = vpop.permute.xlu0 %434
    %v437 = vmul.f32 %v427, %v435
    %v438 = vmul.f32 %v429, %v435
    %439 = vset.pattern.permute.xlu0 5
    %440 = vperm.xlu0 %439, %v95
    %v441 = vpop.permute.xlu0 %440
    %v443 = vadd.f32 %v437, %v441
    %v444 = vadd.f32 %v438, %v441
    %v445 = vadd.f32 %v443, %v53
    %v446 = vadd.f32 %v444, %v54
    %v447 = vmax.f32 %v445, 0.0
    %v448 = vmax.f32 %v446, 0.0
    %449 = vst [vmem:[#allocation8] sm:$0xff] %v447
    %450 = vst [vmem:[#allocation8 + $0x8] sm:$0xff] %v448
    // Predicated region
    $region26: #{tpu_custom_call.1} parent=1 // pred_check
      _
    $region27: #{tpu_custom_call.1} parent=1 // pred_check_branch
      %452 = sbr.rel (0) target = $region29
    $region28: #{tpu_custom_call.1} parent=1 // pred_region
      %s454 = ssub.s32 256, 256
      %455 = vsyncadd [#allocation4], %s454
      %s457 = sshll.u32 [#allocation8], 4
      %s458 = int_to_ptr.vmem [resolvable:$true] %s457
      %460 = dma.vmem_to_hbm [thread:$0]  %s458, 256, %s3, [#allocation4]
    $region29: #{tpu_custom_call.1} parent=1 // pred_fallthru
      _
    // Predicated region
    $region30: #{tpu_custom_call.1} parent=1 // pred_check
      _
    $region31: #{tpu_custom_call.1} parent=1 // pred_check_branch
      %462 = sbr.rel (0) target = $region33
    $region32: #{tpu_custom_call.1} parent=1 // pred_region
      %463 = dma.done [#allocation4], 256
    $region33: #{tpu_custom_call.1} parent=1 // pred_fallthru
      _
    %464 = vsyncpa [#allocation3], 1
    %465 = vsyncpa [#allocation6], 1
    %466 = vsyncpa [#allocation4], 1

</llo_original>
